<compile_context>
chip_gen: v7x
topology: tpu7x:2x2x1
jax: 0.10.0
libtpu: 0.0.40
codegen_flags: <defaults>
</compile_context>

<pallas_src>
import functools
import math

import jax
import jax.numpy as jnp
from jax.experimental import pallas as pl
from jax.experimental.pallas import tpu as pltpu

LOGIT_MIN = -5.0
LOGIT_MAX = 5.0

_LANE = 128        # lane pad for hidden/action feature axes (vreg / MXU width)
_BIAS_ROWS = 8     # sublane-aligned row count of the separate f32 bias slab
_TILE_CAP = 1024   # max batch rows per grid step (vreg-pressure bound)


def _round_up(x, m):
    return (x + m - 1) // m * m


def _policy_kernel(x_ref, w_ref, b_ref, o_ref):
    """Fused 3-layer MLP + clip on one (tm, F) batch tile.

    w_ref packs [w1; w2; w3] row-wise, lane-padded to LP = w_ref.shape[1]:
      rows [0:F]                   : w1 (F  -> LP)
      rows [f_rows : f_rows+LP]    : w2 (LP -> LP)
      rows [f_rows+LP : f_rows+2LP]: w3 (LP -> LP)
    with f_rows = round_up(F, 8).  b_ref rows 0/1/2 hold the f32 biases.
    """
    lp = w_ref.shape[1]
    f = x_ref.shape[1]
    f_rows = w_ref.shape[0] - 2 * lp
    mm_dt = w_ref.dtype  # bf16 = MXU-native everywhere; f32 = exact-parity path

    def layer(x_f32, w, b_row, relu):
        acc = jnp.dot(x_f32.astype(mm_dt), w, preferred_element_type=jnp.float32)
        acc = acc + b_ref[b_row:b_row + 1, :]          # f32 elementwise (v5e-safe)
        return jnp.maximum(acc, 0.0) if relu else acc

    h1 = layer(x_ref[...], w_ref[0:f, :], 0, True)
    h2 = layer(h1, w_ref[f_rows:f_rows + lp, :], 1, True)
    logits = layer(h2, w_ref[f_rows + lp:f_rows + 2 * lp, :], 2, False)
    o_ref[...] = jnp.clip(logits, LOGIT_MIN, LOGIT_MAX).astype(o_ref.dtype)


@functools.partial(jax.jit, static_argnames=("num_actions", "tile_cap"))
def relaxed_bernoulli_policy_forward(state, w_slab, b_slab, num_actions,
                                     *, tile_cap=_TILE_CAP):
    """state: [B, num_inputs] f32. Returns clamped bernoulli logits [B, num_actions] f32."""
    B, F = state.shape
    lp = w_slab.shape[1]
    f_rows = w_slab.shape[0] - 2 * lp
    if _round_up(F, 8) != f_rows:
        raise ValueError(
            f"state feature dim {F} does not match packed params "
            f"(slab expects round_up(F, 8) == {f_rows})")

    # Grid sizing: one big tile on single-TC chips; >=2 (even) tiles once B>=512
    # so both v7x TensorCores get work; cap rows/tile to bound vreg pressure.
    n_tiles = max(1, pl.cdiv(B, tile_cap))
    if B >= 512:
        n_tiles = max(n_tiles, 2)
    if n_tiles > 1 and n_tiles % 2:
        n_tiles += 1
    b_pad = _round_up(B, 8 * n_tiles)
    tm = b_pad // n_tiles                 # multiple of 8 by construction

    x = state
    if b_pad != B:                        # batch-only pad: at most 8*n_tiles-1 rows
        x = jnp.zeros((b_pad, F), state.dtype).at[:B, :].set(state)

    out = pl.pallas_call(
        _policy_kernel,
        out_shape=jax.ShapeDtypeStruct((b_pad, lp), jnp.float32),
        grid=(n_tiles,),
        in_specs=[
            pl.BlockSpec((tm, F), lambda i: (i, 0)),        # unpadded features (full last dim)
            pl.BlockSpec(w_slab.shape, lambda i: (0, 0)),   # weights VMEM-resident across steps
            pl.BlockSpec(b_slab.shape, lambda i: (0, 0)),   # small f32 bias slab
        ],
        out_specs=pl.BlockSpec((tm, lp), lambda i: (i, 0)),  # lane-dense (128) store
        compiler_params=pltpu.CompilerParams(
            dimension_semantics=("parallel",),               # shards batch tiles across v7x TCs
        ),
    )(x, w_slab, b_slab)

    # Folded into the same jit as the kernel: one dispatch for pad+kernel+slice.
    return out[:B, :num_actions]


def pack_params(w1, b1, w2, b2, w3, b3, *, matmul_dtype=jnp.bfloat16):
    """Pack [in,out] weights into one lane-padded slab (matmul dtype) + f32 bias slab."""
    F, H1 = w1.shape
    _, H2 = w2.shape
    _, A = w3.shape
    lp = _round_up(max(H1, H2, A), _LANE)
    f_rows = _round_up(F, 8)
    w_slab = jnp.zeros((f_rows + 2 * lp, lp), jnp.float32)
    w_slab = w_slab.at[0:F, 0:H1].set(w1)
    w_slab = w_slab.at[f_rows:f_rows + H1, 0:H2].set(w2)
    w_slab = w_slab.at[f_rows + lp:f_rows + lp + H2, 0:A].set(w3)
    b_slab = jnp.zeros((_BIAS_ROWS, lp), jnp.float32)
    b_slab = b_slab.at[0, 0:H1].set(b1.reshape(-1))
    b_slab = b_slab.at[1, 0:H2].set(b2.reshape(-1))
    b_slab = b_slab.at[2, 0:A].set(b3.reshape(-1))
    return w_slab.astype(matmul_dtype), b_slab


def init_params(key, num_inputs, num_actions, hidden_dim, matmul_dtype=jnp.bfloat16):
    """Xavier-uniform (gain=1) weights, zero biases — matches weights_init_.

    Weights are stored pre-transposed as [in, out] (vs torch's [out, in]).
    """
    if isinstance(hidden_dim, int):
        hidden_dim = [hidden_dim, hidden_dim]
    dims = [num_inputs] + list(hidden_dim) + [num_actions]
    assert len(dims) == 4, "kernel is specialised to the 2-hidden-layer policy"

    keys = jax.random.split(key, 3)
    params, ws, bs = {}, [], []
    for i, (din, dout) in enumerate(zip(dims[:-1], dims[1:]), start=1):
        bound = math.sqrt(6.0 / (din + dout))
        w = jax.random.uniform(keys[i - 1], (din, dout), jnp.float32, -bound, bound)
        b = jnp.zeros((dout,), jnp.float32)
        params[f"w{i}"], params[f"b{i}"] = w, b
        ws.append(w)
        bs.append(b)
    params["w_slab"], params["b_slab"] = pack_params(
        ws[0], bs[0], ws[1], bs[1], ws[2], bs[2], matmul_dtype=matmul_dtype)
    return params


def _reference_forward(state, params):
    h1 = jnp.maximum(state @ params["w1"] + params["b1"], 0.0)
    h2 = jnp.maximum(h1 @ params["w2"] + params["b2"], 0.0)
    return jnp.clip(h2 @ params["w3"] + params["b3"], LOGIT_MIN, LOGIT_MAX)


if __name__ == "__main__":
    key = jax.random.PRNGKey(0)
    k_state, k_params, k_state2 = jax.random.split(key, 3)

    num_inputs, num_actions, hidden_dim = 16, 8, 32
    relaxed_bernoulli_temp = 1.0  # module buffer; unused in forward()

    # f32 slabs: exact parity with the pure-JAX reference.
    params = init_params(k_params, num_inputs, num_actions, hidden_dim,
                         matmul_dtype=jnp.float32)

    batch = 64
    state = jax.random.normal(k_state, (batch, num_inputs), jnp.float32)
    logits = jax.block_until_ready(
        relaxed_bernoulli_policy_forward(state, params["w_slab"], params["b_slab"],
                                         num_actions))
    ref = _reference_forward(state, params)
    assert logits.shape == (batch, num_actions)
    assert jnp.allclose(logits, ref, atol=1e-5, rtol=1e-5)

    # Ragged batch: exercises the batch-only 8-row pad path.
    state_small = jax.random.normal(k_state2, (6, num_inputs), jnp.float32)
    logits_small = jax.block_until_ready(
        relaxed_bernoulli_policy_forward(state_small, params["w_slab"],
                                         params["b_slab"], num_actions))
    assert logits_small.shape == (6, num_actions)
    assert jnp.allclose(logits_small, _reference_forward(state_small, params),
                        atol=1e-5, rtol=1e-5)

    # bf16 matmul-input path (default, MXU-native on all gens; biases stay f32).
    w_bf16, b_f32 = pack_params(params["w1"], params["b1"], params["w2"], params["b2"],
                                params["w3"], params["b3"], matmul_dtype=jnp.bfloat16)
    logits_bf16 = jax.block_until_ready(
        relaxed_bernoulli_policy_forward(state, w_bf16, b_f32, num_actions))
    assert logits_bf16.shape == (batch, num_actions)
    assert float(jnp.max(jnp.abs(logits_bf16 - ref))) < 0.1

    # TODO(synk): sample() (RelaxedBernoulli rsample/log_prob) is stochastic and not
    # part of forward(); only the deterministic forward pass is kernelized here.

    print("KERNEL_OK")
</pallas_src>

<mosaic_0001>
module attributes {stable_mosaic.version = 11 : i64} {
  func.func @_policy_kernel(%arg0: i32, %arg1: memref<64x16xf32, #tpu.memory_space<vmem>>, %arg2: memref<272x128xf32, #tpu.memory_space<vmem>>, %arg3: memref<8x128xf32, #tpu.memory_space<vmem>>, %arg4: memref<64x128xf32, #tpu.memory_space<vmem>>) attributes {dimension_semantics = [#tpu.dimension_semantics<parallel>], iteration_bounds = array<i64: 1>, scalar_prefetch = 0 : i64, scratch_operands = 0 : i64, tpu.core_type = #tpu.core_type<tc>, window_params = [{transform_indices = @transform_0, window_bounds = array<i64: 64, 16>}, {pipeline_mode = #tpu.pipeline_mode<synchronous>, transform_indices = @transform_1, window_bounds = array<i64: 272, 128>}, {pipeline_mode = #tpu.pipeline_mode<synchronous>, transform_indices = @transform_2, window_bounds = array<i64: 8, 128>}, {transform_indices = @transform_3, window_bounds = array<i64: 64, 128>}]} {
    %c0 = arith.constant 0 : index
    %c0_0 = arith.constant 0 : index
    %0 = vector.load %arg1[%c0, %c0_0] : memref<64x16xf32, #tpu.memory_space<vmem>>, vector<64x16xf32>
    %c0_1 = arith.constant 0 : index
    %c0_2 = arith.constant 0 : index
    %1 = vector.load %arg2[%c0_1, %c0_2] : memref<272x128xf32, #tpu.memory_space<vmem>>, vector<16x128xf32>
    %cst = arith.constant dense<0.000000e+00> : vector<64x128xf32>
    %2 = tpu.matmul %0, %1, %cst {dimension_numbers = #tpu.dot_dimension_numbers<[1], [0], [0], [1], [0, 0, 1, 1], [], []>} : vector<64x16xf32>, vector<16x128xf32>, vector<64x128xf32> -> vector<64x128xf32>
    %c0_3 = arith.constant 0 : index
    %c0_4 = arith.constant 0 : index
    %3 = vector.load %arg3[%c0_3, %c0_4] : memref<8x128xf32, #tpu.memory_space<vmem>>, vector<1x128xf32>
    %4 = vector.broadcast %3 : vector<1x128xf32> to vector<64x128xf32>
    %5 = arith.addf %2, %4 : vector<64x128xf32>
    %cst_5 = arith.constant 0.000000e+00 : f32
    %6 = vector.broadcast %cst_5 : f32 to vector<64x128xf32>
    %7 = arith.maximumf %5, %6 : vector<64x128xf32>
    %c16 = arith.constant 16 : index
    %c0_6 = arith.constant 0 : index
    %8 = vector.load %arg2[%c16, %c0_6] : memref<272x128xf32, #tpu.memory_space<vmem>>, vector<128x128xf32>
    %cst_7 = arith.constant dense<0.000000e+00> : vector<64x128xf32>
    %9 = tpu.matmul %7, %8, %cst_7 {dimension_numbers = #tpu.dot_dimension_numbers<[1], [0], [0], [1], [0, 0, 1, 1], [], []>} : vector<64x128xf32>, vector<128x128xf32>, vector<64x128xf32> -> vector<64x128xf32>
    %c1 = arith.constant 1 : index
    %c0_8 = arith.constant 0 : index
    %10 = vector.load %arg3[%c1, %c0_8] : memref<8x128xf32, #tpu.memory_space<vmem>>, vector<1x128xf32>
    %11 = vector.broadcast %10 : vector<1x128xf32> to vector<64x128xf32>
    %12 = arith.addf %9, %11 : vector<64x128xf32>
    %cst_9 = arith.constant 0.000000e+00 : f32
    %13 = vector.broadcast %cst_9 : f32 to vector<64x128xf32>
    %14 = arith.maximumf %12, %13 : vector<64x128xf32>
    %c144 = arith.constant 144 : index
    %c0_10 = arith.constant 0 : index
    %15 = vector.load %arg2[%c144, %c0_10] : memref<272x128xf32, #tpu.memory_space<vmem>>, vector<128x128xf32>
    %cst_11 = arith.constant dense<0.000000e+00> : vector<64x128xf32>
    %16 = tpu.matmul %14, %15, %cst_11 {dimension_numbers = #tpu.dot_dimension_numbers<[1], [0], [0], [1], [0, 0, 1, 1], [], []>} : vector<64x128xf32>, vector<128x128xf32>, vector<64x128xf32> -> vector<64x128xf32>
    %c2 = arith.constant 2 : index
    %c0_12 = arith.constant 0 : index
    %17 = vector.load %arg3[%c2, %c0_12] : memref<8x128xf32, #tpu.memory_space<vmem>>, vector<1x128xf32>
    %18 = vector.broadcast %17 : vector<1x128xf32> to vector<64x128xf32>
    %19 = arith.addf %16, %18 : vector<64x128xf32>
    %cst_13 = arith.constant -5.000000e+00 : f32
    %cst_14 = arith.constant 5.000000e+00 : f32
    %20 = vector.broadcast %cst_13 : f32 to vector<64x128xf32>
    %21 = arith.maximumf %20, %19 : vector<64x128xf32>
    %22 = vector.broadcast %cst_14 : f32 to vector<64x128xf32>
    %23 = arith.minimumf %22, %21 : vector<64x128xf32>
    %c0_15 = arith.constant 0 : index
    %c0_16 = arith.constant 0 : index
    %24 = vector.load %arg4[%c0_15, %c0_16] : memref<64x128xf32, #tpu.memory_space<vmem>>, vector<64x128xf32>
    tpu.vector_store %arg4[%c0_15, %c0_16], %23 {strides = array<i32>} : memref<64x128xf32, #tpu.memory_space<vmem>>, vector<64x128xf32>,
    return
  }
  func.func @transform_0(%arg0: i32) -> (i32, i32) {
    %c0_i32 = arith.constant 0 : i32
    %c0_i32_0 = arith.constant 0 : i32
    return %arg0, %c0_i32 : i32, i32
  }
  func.func @transform_1(%arg0: i32) -> (i32, i32) {
    %c0_i32 = arith.constant 0 : i32
    %c0_i32_0 = arith.constant 0 : i32
    %c0_i32_1 = arith.constant 0 : i32
    return %c0_i32, %c0_i32_0 : i32, i32
  }
  func.func @transform_2(%arg0: i32) -> (i32, i32) {
    %c0_i32 = arith.constant 0 : i32
    %c0_i32_0 = arith.constant 0 : i32
    %c0_i32_1 = arith.constant 0 : i32
    return %c0_i32, %c0_i32_0 : i32, i32
  }
  func.func @transform_3(%arg0: i32) -> (i32, i32) {
    %c0_i32 = arith.constant 0 : i32
    %c0_i32_0 = arith.constant 0 : i32
    return %arg0, %c0_i32 : i32, i32
  }
}

</mosaic_0001>

<llo_original>
// kernel: relaxed_bernoulli_policy_forward.1
$region0: #{relaxed_bernoulli_policy_forward.1}
  #allocation0 [shape = 'u32[]', space=smem, size = 0x4, offset = 0x4, fixed_abs, tag = 'smem constant byte address 0x4 - core index']
  #allocation1 [shape = 'u32[144,128]{1,0:T(1,128)}', space=vmem, size = 0x12000, scoped, tag = 'internal scratch']
  %s0 = inlined_call_operand.vmem [shape: f32[64,16], index: 0, kind: input, shape index: {}]
  %s1 = inlined_call_operand.hbm [shape: f32[272,128], index: 1, kind: input, shape index: {}]
  %s2 = inlined_call_operand.vmem [shape: f32[8,128], index: 2, kind: input, shape index: {}]
  %s3 = inlined_call_operand.vmem [shape: f32[64,128], index: 3, kind: output, shape index: {}]
  %s4 = sld [smem:[#allocation0]]
  $region26: #{relaxed_bernoulli_policy_forward.1} parent=0
    _
  %s6 = ssub.s32 1, %s4
  %s7 = scalar_select 0, %s6, %s4
  $region1: #{relaxed_bernoulli_policy_forward.1} parent=0
    #allocation2 [shape = 'u8[139264]{0}', space=vmem, size = 0x22000, scoped, tag = 'input window, operand 1, single buffered']
    #allocation3 [shape = 's32[1]{0}', space=sflag, size = 0x4, scoped, tag = 'scoped memory for relaxed_bernoulli_policy_forward.1']
    %8 = vsyncpa [#allocation3], 0
    // Predicated region
    $region2: #{relaxed_bernoulli_policy_forward.1} parent=1 // pred_check
      _
    $region3: #{relaxed_bernoulli_policy_forward.1} parent=1 // pred_check_branch
      %10 = sbr.rel (0) target = $region5
    $region4: #{relaxed_bernoulli_policy_forward.1} parent=1 // pred_region
      _
    $region5: #{relaxed_bernoulli_policy_forward.1} parent=1 // pred_fallthru
      _
    // Predicated region
    $region6: #{relaxed_bernoulli_policy_forward.1} parent=1 // pred_check
      _
    $region7: #{relaxed_bernoulli_policy_forward.1} parent=1 // pred_check_branch
      %12 = sbr.rel (0) target = $region9
    $region8: #{relaxed_bernoulli_policy_forward.1} parent=1 // pred_region
      %s14 = ssub.s32 4352, 4352
      %15 = vsyncadd [#allocation3], %s14
      %s16 = sshll.u32 [#allocation2], 4
      %s17 = int_to_ptr.vmem [resolvable:$true] %s16
      %22 = dma.hbm_to_vmem [thread:$0]  %s1, 4352, %s17, [#allocation3], 128, 128, 8
    $region9: #{relaxed_bernoulli_policy_forward.1} parent=1 // pred_fallthru
      _
    // Predicated region
    $region10: #{relaxed_bernoulli_policy_forward.1} parent=1 // pred_check
      _
    $region11: #{relaxed_bernoulli_policy_forward.1} parent=1 // pred_check_branch
      %24 = sbr.rel (0) target = $region13
    $region12: #{relaxed_bernoulli_policy_forward.1} parent=1 // pred_region
      _
    $region13: #{relaxed_bernoulli_policy_forward.1} parent=1 // pred_fallthru
      _
    // Predicated region
    $region14: #{relaxed_bernoulli_policy_forward.1} parent=1 // pred_check
      _
    $region15: #{relaxed_bernoulli_policy_forward.1} parent=1 // pred_check_branch
      %26 = sbr.rel (0) target = $region17
    $region16: #{relaxed_bernoulli_policy_forward.1} parent=1 // pred_region
      %27 = dma.done [#allocation3], 4352
    $region17: #{relaxed_bernoulli_policy_forward.1} parent=1 // pred_fallthru
      _
    %v28 = vld [vmem:[%s0] sm:$0xff]
    %v29 = vld [vmem:[%s0 + $0x8] sm:$0xff]
    %v30 = vld [vmem:[%s0 + $0x10] sm:$0xff]
    %v31 = vld [vmem:[%s0 + $0x18] sm:$0xff]
    %v32 = vld [vmem:[%s0 + $0x20] sm:$0xff]
    %v33 = vld [vmem:[%s0 + $0x28] sm:$0xff]
    %v34 = vld [vmem:[%s0 + $0x30] sm:$0xff]
    %v35 = vld [vmem:[%s0 + $0x38] sm:$0xff]
    %v36 = vld [vmem:[#allocation2] sm:$0xff]
    %v37 = vld [vmem:[#allocation2 + $0x8] sm:$0xff]
    %v38 = vld [vmem:[%s2] sm:$0x1]
    %v39 = vlaneseq
    %v40 = vshrl.u32 %v39, 7
    %v41 = vsub.s32 0, %v40
    %v42 = vrot.slane %v38, %v41
    %vm43 = vcmask 130048
    %v45 = vsel %vm43, %v28, 0
    %v48 = vsel %vm43, %v29, 0
    %v51 = vsel %vm43, %v30, 0
    %v54 = vsel %vm43, %v31, 0
    %v57 = vsel %vm43, %v32, 0
    %v60 = vsel %vm43, %v33, 0
    %v63 = vsel %vm43, %v34, 0
    %v66 = vsel %vm43, %v35, 0
    %68 = vmatprep.subr.mxu0 0.0
    %69 = vmatpush1.msra.mxu0 %v36
    %70 = vmatprep.subr.mxu0 0.0
    %71 = vmatpush1.msra.mxu0 %v37
    %72 = vmatprep.subr.mxu0 0.0
    %73 = vmatpush1.msra.mxu0 0.0
    %74 = vmatprep.subr.mxu0 0.0
    %75 = vmatpush1.msra.mxu0 0.0
    %76 = vmatprep.subr.mxu0 0.0
    %77 = vmatpush1.msra.mxu0 0.0
    %78 = vmatprep.subr.mxu0 0.0
    %79 = vmatpush1.msra.mxu0 0.0
    %80 = vmatprep.subr.mxu0 0.0
    %81 = vmatpush1.msra.mxu0 0.0
    %82 = vmatprep.subr.mxu0 0.0
    %83 = vmatpush1.msra.mxu0 0.0
    %84 = vmatprep.subr.mxu0 0.0
    %85 = vmatpush1.msra.mxu0 0.0
    %86 = vmatprep.subr.mxu0 0.0
    %87 = vmatpush1.msra.mxu0 0.0
    %88 = vmatprep.subr.mxu0 0.0
    %89 = vmatpush1.msra.mxu0 0.0
    %90 = vmatprep.subr.mxu0 0.0
    %91 = vmatpush1.msra.mxu0 0.0
    %92 = vmatprep.subr.mxu0 0.0
    %93 = vmatpush1.msra.mxu0 0.0
    %94 = vmatprep.subr.mxu0 0.0
    %95 = vmatpush1.msra.mxu0 0.0
    %96 = vmatprep.subr.mxu0 0.0
    %97 = vmatpush1.msra.mxu0 0.0
    %98 = vmatprep.subr.mxu0 0.0
    %99 = vmatpush1.msra.mxu0 0.0
    %100 = vmatprep.subr.mxu0 0.0
    %101 = vmatpush1.msra.mxu0 0.0
    %102 = vmatprep.subr.mxu0 0.0
    %103 = vmatpush1.msra.mxu0 0.0
    %104 = vmatprep.subr.mxu0 0.0
    %105 = vmatpush1.msra.mxu0 0.0
    %106 = vmatprep.subr.mxu0 0.0
    %107 = vmatpush1.msra.mxu0 0.0
    %108 = vmatprep.subr.mxu0 0.0
    %109 = vmatpush1.msra.mxu0 0.0
    %110 = vmatprep.subr.mxu0 0.0
    %111 = vmatpush1.msra.mxu0 0.0
    %112 = vmatprep.subr.mxu0 0.0
    %113 = vmatpush1.msra.mxu0 0.0
    %114 = vmatprep.subr.mxu0 0.0
    %115 = vmatpush1.msra.mxu0 0.0
    %116 = vmatprep.subr.mxu0 0.0
    %117 = vmatpush1.msra.mxu0 0.0
    %118 = vmatprep.subr.mxu0 0.0
    %119 = vmatpush1.msra.mxu0 0.0
    %120 = vmatprep.subr.mxu0 0.0
    %121 = vmatpush1.msra.mxu0 0.0
    %122 = vmatprep.subr.mxu0 0.0
    %123 = vmatpush1.msra.mxu0 0.0
    %124 = vmatprep.subr.mxu0 0.0
    %125 = vmatpush1.msra.mxu0 0.0
    %126 = vmatprep.subr.mxu0 0.0
    %127 = vmatpush1.msra.mxu0 0.0
    %128 = vmatprep.subr.mxu0 0.0
    %129 = vmatpush1.msra.mxu0 0.0
    %130 = vmatprep.subr.mxu0 0.0
    %131 = vmatpush1.msra.mxu0 0.0
    %132 = vmatprep.mubr.f32.mxu0 0.0
    %133 = vmatmul.mubr.f32.gmra.mrb[0].mxu0 %v45
    %v134 = vpop.f32.mrb[0].mxu0
    %v135 = vadd.f32 %v42, %v134
    %v136 = vpop.f32.mrb[0].mxu0
    %137 = vmatprep.mubr.f32.mxu0 0.0
    %138 = vmatmul.mubr.f32.gmra.mrb[0].mxu0 %v48
    %v139 = vpop.f32.mrb[0].mxu0
    %v140 = vadd.f32 %v42, %v139
    %v141 = vpop.f32.mrb[0].mxu0
    %142 = vmatprep.mubr.f32.mxu0 0.0
    %143 = vmatmul.mubr.f32.gmra.mrb[0].mxu0 %v51
    %v144 = vpop.f32.mrb[0].mxu0
    %v145 = vadd.f32 %v42, %v144
    %v146 = vpop.f32.mrb[0].mxu0
    %147 = vmatprep.mubr.f32.mxu0 0.0
    %148 = vmatmul.mubr.f32.gmra.mrb[0].mxu0 %v54
    %v149 = vpop.f32.mrb[0].mxu0
    %v150 = vadd.f32 %v42, %v149
    %v151 = vpop.f32.mrb[0].mxu0
    %152 = vmatprep.mubr.f32.mxu0 0.0
    %153 = vmatmul.mubr.f32.gmra.mrb[0].mxu0 %v57
    %v154 = vpop.f32.mrb[0].mxu0
    %v155 = vadd.f32 %v42, %v154
    %v156 = vpop.f32.mrb[0].mxu0
    %157 = vmatprep.mubr.f32.mxu0 0.0
    %158 = vmatmul.mubr.f32.gmra.mrb[0].mxu0 %v60
    %v159 = vpop.f32.mrb[0].mxu0
    %v160 = vadd.f32 %v42, %v159
    %v161 = vpop.f32.mrb[0].mxu0
    %162 = vmatprep.mubr.f32.mxu0 0.0
    %163 = vmatmul.mubr.f32.gmra.mrb[0].mxu0 %v63
    %v164 = vpop.f32.mrb[0].mxu0
    %v165 = vadd.f32 %v42, %v164
    %v166 = vpop.f32.mrb[0].mxu0
    %167 = vmatprep.mubr.f32.mxu0 0.0
    %168 = vmatmul.mubr.f32.gmra.mrb[0].mxu0 %v66
    %v169 = vpop.f32.mrb[0].mxu0
    %v170 = vadd.f32 %v42, %v169
    %v171 = vpop.f32.mrb[0].mxu0
    %172 = vdwg.mxu0
    %v173 = vmax.f32 %v135, 0.0
    %v174 = vmax.f32 %v140, 0.0
    %v175 = vmax.f32 %v145, 0.0
    %v176 = vmax.f32 %v150, 0.0
    %v177 = vmax.f32 %v155, 0.0
    %v178 = vmax.f32 %v160, 0.0
    %v179 = vmax.f32 %v165, 0.0
    %v180 = vmax.f32 %v170, 0.0
    %v181 = vld [vmem:[#allocation2 + $0x10] sm:$0xff]
    %v182 = vld [vmem:[#allocation2 + $0x18] sm:$0xff]
    %v183 = vld [vmem:[#allocation2 + $0x20] sm:$0xff]
    %v184 = vld [vmem:[#allocation2 + $0x28] sm:$0xff]
    %v185 = vld [vmem:[#allocation2 + $0x30] sm:$0xff]
    %v186 = vld [vmem:[#allocation2 + $0x38] sm:$0xff]
    %v187 = vld [vmem:[#allocation2 + $0x40] sm:$0xff]
    %v188 = vld [vmem:[#allocation2 + $0x48] sm:$0xff]
    %v189 = vld [vmem:[#allocation2 + $0x50] sm:$0xff]
    %v190 = vld [vmem:[#allocation2 + $0x58] sm:$0xff]
    %v191 = vld [vmem:[#allocation2 + $0x60] sm:$0xff]
    %v192 = vld [vmem:[#allocation2 + $0x68] sm:$0xff]
    %v193 = vld [vmem:[#allocation2 + $0x70] sm:$0xff]
    %v194 = vld [vmem:[#allocation2 + $0x78] sm:$0xff]
    %v195 = vld [vmem:[#allocation2 + $0x80] sm:$0xff]
    %v196 = vld [vmem:[#allocation2 + $0x88] sm:$0xff]
    %v197 = vld [vmem:[%s2 + $0x1] sm:$0x1]
    %v198 = vlaneseq
    %v199 = vshrl.u32 %v198, 7
    %v200 = vsub.s32 0, %v199
    %v201 = vrot.slane %v197, %v200
    %202 = vmatprep.subr.mxu0 0.0
    %203 = vmatpush1.msra.mxu0 %v181
    %204 = vmatprep.subr.mxu0 0.0
    %205 = vmatpush1.msra.mxu0 %v182
    %206 = vmatprep.subr.mxu0 0.0
    %207 = vmatpush1.msra.mxu0 %v183
    %208 = vmatprep.subr.mxu0 0.0
    %209 = vmatpush1.msra.mxu0 %v184
    %210 = vmatprep.subr.mxu0 0.0
    %211 = vmatpush1.msra.mxu0 %v185
    %212 = vmatprep.subr.mxu0 0.0
    %213 = vmatpush1.msra.mxu0 %v186
    %214 = vmatprep.subr.mxu0 0.0
    %215 = vmatpush1.msra.mxu0 %v187
    %216 = vmatprep.subr.mxu0 0.0
    %217 = vmatpush1.msra.mxu0 %v188
    %218 = vmatprep.subr.mxu0 0.0
    %219 = vmatpush1.msra.mxu0 %v189
    %220 = vmatprep.subr.mxu0 0.0
    %221 = vmatpush1.msra.mxu0 %v190
    %222 = vmatprep.subr.mxu0 0.0
    %223 = vmatpush1.msra.mxu0 %v191
    %224 = vmatprep.subr.mxu0 0.0
    %225 = vmatpush1.msra.mxu0 %v192
    %226 = vmatprep.subr.mxu0 0.0
    %227 = vmatpush1.msra.mxu0 %v193
    %228 = vmatprep.subr.mxu0 0.0
    %229 = vmatpush1.msra.mxu0 %v194
    %230 = vmatprep.subr.mxu0 0.0
    %231 = vmatpush1.msra.mxu0 %v195
    %232 = vmatprep.subr.mxu0 0.0
    %233 = vmatpush1.msra.mxu0 %v196
    %234 = vmatprep.subr.mxu0 0.0
    %235 = vmatpush1.msra.mxu0 0.0
    %236 = vmatprep.subr.mxu0 0.0
    %237 = vmatpush1.msra.mxu0 0.0
    %238 = vmatprep.subr.mxu0 0.0
    %239 = vmatpush1.msra.mxu0 0.0
    %240 = vmatprep.subr.mxu0 0.0
    %241 = vmatpush1.msra.mxu0 0.0
    %242 = vmatprep.subr.mxu0 0.0
    %243 = vmatpush1.msra.mxu0 0.0
    %244 = vmatprep.subr.mxu0 0.0
    %245 = vmatpush1.msra.mxu0 0.0
    %246 = vmatprep.subr.mxu0 0.0
    %247 = vmatpush1.msra.mxu0 0.0
    %248 = vmatprep.subr.mxu0 0.0
    %249 = vmatpush1.msra.mxu0 0.0
    %250 = vmatprep.subr.mxu0 0.0
    %251 = vmatpush1.msra.mxu0 0.0
    %252 = vmatprep.subr.mxu0 0.0
    %253 = vmatpush1.msra.mxu0 0.0
    %254 = vmatprep.subr.mxu0 0.0
    %255 = vmatpush1.msra.mxu0 0.0
    %256 = vmatprep.subr.mxu0 0.0
    %257 = vmatpush1.msra.mxu0 0.0
    %258 = vmatprep.subr.mxu0 0.0
    %259 = vmatpush1.msra.mxu0 0.0
    %260 = vmatprep.subr.mxu0 0.0
    %261 = vmatpush1.msra.mxu0 0.0
    %262 = vmatprep.subr.mxu0 0.0
    %263 = vmatpush1.msra.mxu0 0.0
    %264 = vmatprep.subr.mxu0 0.0
    %265 = vmatpush1.msra.mxu0 0.0
    %266 = vmatprep.mubr.f32.mxu0 0.0
    %267 = vmatmul.mubr.f32.gmra.mrb[0].mxu0 %v173
    %v268 = vpop.f32.mrb[0].mxu0
    %v269 = vadd.f32 %v201, %v268
    %v270 = vpop.f32.mrb[0].mxu0
    %271 = vmatprep.mubr.f32.mxu0 0.0
    %272 = vmatmul.mubr.f32.gmra.mrb[0].mxu0 %v174
    %v273 = vpop.f32.mrb[0].mxu0
    %v274 = vadd.f32 %v201, %v273
    %v275 = vpop.f32.mrb[0].mxu0
    %276 = vmatprep.mubr.f32.mxu0 0.0
    %277 = vmatmul.mubr.f32.gmra.mrb[0].mxu0 %v175
    %v278 = vpop.f32.mrb[0].mxu0
    %v279 = vadd.f32 %v201, %v278
    %v280 = vpop.f32.mrb[0].mxu0
    %281 = vmatprep.mubr.f32.mxu0 0.0
    %282 = vmatmul.mubr.f32.gmra.mrb[0].mxu0 %v176
    %v283 = vpop.f32.mrb[0].mxu0
    %v284 = vadd.f32 %v201, %v283
    %v285 = vpop.f32.mrb[0].mxu0
    %286 = vmatprep.mubr.f32.mxu0 0.0
    %287 = vmatmul.mubr.f32.gmra.mrb[0].mxu0 %v177
    %v288 = vpop.f32.mrb[0].mxu0
    %v289 = vadd.f32 %v201, %v288
    %v290 = vpop.f32.mrb[0].mxu0
    %291 = vmatprep.mubr.f32.mxu0 0.0
    %292 = vmatmul.mubr.f32.gmra.mrb[0].mxu0 %v178
    %v293 = vpop.f32.mrb[0].mxu0
    %v294 = vadd.f32 %v201, %v293
    %v295 = vpop.f32.mrb[0].mxu0
    %296 = vmatprep.mubr.f32.mxu0 0.0
    %297 = vmatmul.mubr.f32.gmra.mrb[0].mxu0 %v179
    %v298 = vpop.f32.mrb[0].mxu0
    %v299 = vadd.f32 %v201, %v298
    %v300 = vpop.f32.mrb[0].mxu0
    %301 = vmatprep.mubr.f32.mxu0 0.0
    %302 = vmatmul.mubr.f32.gmra.mrb[0].mxu0 %v180
    %v303 = vpop.f32.mrb[0].mxu0
    %v304 = vadd.f32 %v201, %v303
    %v305 = vpop.f32.mrb[0].mxu0
    %306 = vdwg.mxu0
    %v307 = vmax.f32 %v269, 0.0
    %v308 = vmax.f32 %v274, 0.0
    %v309 = vmax.f32 %v279, 0.0
    %v310 = vmax.f32 %v284, 0.0
    %v311 = vmax.f32 %v289, 0.0
    %v312 = vmax.f32 %v294, 0.0
    %v313 = vmax.f32 %v299, 0.0
    %v314 = vmax.f32 %v304, 0.0
    %v315 = vld [vmem:[#allocation2 + $0x90] sm:$0xff]
    %v316 = vld [vmem:[#allocation2 + $0x98] sm:$0xff]
    %v317 = vld [vmem:[#allocation2 + $0xa0] sm:$0xff]
    %v318 = vld [vmem:[#allocation2 + $0xa8] sm:$0xff]
    %v319 = vld [vmem:[#allocation2 + $0xb0] sm:$0xff]
    %v320 = vld [vmem:[#allocation2 + $0xb8] sm:$0xff]
    %v321 = vld [vmem:[#allocation2 + $0xc0] sm:$0xff]
    %v322 = vld [vmem:[#allocation2 + $0xc8] sm:$0xff]
    %v323 = vld [vmem:[#allocation2 + $0xd0] sm:$0xff]
    %v324 = vld [vmem:[#allocation2 + $0xd8] sm:$0xff]
    %v325 = vld [vmem:[#allocation2 + $0xe0] sm:$0xff]
    %v326 = vld [vmem:[#allocation2 + $0xe8] sm:$0xff]
    %v327 = vld [vmem:[#allocation2 + $0xf0] sm:$0xff]
    %v328 = vld [vmem:[#allocation2 + $0xf8] sm:$0xff]
    %v329 = vld [vmem:[#allocation2 + $0x100] sm:$0xff]
    %v330 = vld [vmem:[#allocation2 + $0x108] sm:$0xff]
    %v331 = vld [vmem:[%s2 + $0x2] sm:$0x1]
    %v332 = vlaneseq
    %v333 = vshrl.u32 %v332, 7
    %v334 = vsub.s32 0, %v333
    %v335 = vrot.slane %v331, %v334
    %336 = vmatprep.subr.mxu0 0.0
    %337 = vmatpush1.msra.mxu0 %v315
    %338 = vmatprep.subr.mxu0 0.0
    %339 = vmatpush1.msra.mxu0 %v316
    %340 = vmatprep.subr.mxu0 0.0
    %341 = vmatpush1.msra.mxu0 %v317
    %342 = vmatprep.subr.mxu0 0.0
    %343 = vmatpush1.msra.mxu0 %v318
    %344 = vmatprep.subr.mxu0 0.0
    %345 = vmatpush1.msra.mxu0 %v319
    %346 = vmatprep.subr.mxu0 0.0
    %347 = vmatpush1.msra.mxu0 %v320
    %348 = vmatprep.subr.mxu0 0.0
    %349 = vmatpush1.msra.mxu0 %v321
    %350 = vmatprep.subr.mxu0 0.0
    %351 = vmatpush1.msra.mxu0 %v322
    %352 = vmatprep.subr.mxu0 0.0
    %353 = vmatpush1.msra.mxu0 %v323
    %354 = vmatprep.subr.mxu0 0.0
    %355 = vmatpush1.msra.mxu0 %v324
    %356 = vmatprep.subr.mxu0 0.0
    %357 = vmatpush1.msra.mxu0 %v325
    %358 = vmatprep.subr.mxu0 0.0
    %359 = vmatpush1.msra.mxu0 %v326
    %360 = vmatprep.subr.mxu0 0.0
    %361 = vmatpush1.msra.mxu0 %v327
    %362 = vmatprep.subr.mxu0 0.0
    %363 = vmatpush1.msra.mxu0 %v328
    %364 = vmatprep.subr.mxu0 0.0
    %365 = vmatpush1.msra.mxu0 %v329
    %366 = vmatprep.subr.mxu0 0.0
    %367 = vmatpush1.msra.mxu0 %v330
    %368 = vmatprep.subr.mxu0 0.0
    %369 = vmatpush1.msra.mxu0 0.0
    %370 = vmatprep.subr.mxu0 0.0
    %371 = vmatpush1.msra.mxu0 0.0
    %372 = vmatprep.subr.mxu0 0.0
    %373 = vmatpush1.msra.mxu0 0.0
    %374 = vmatprep.subr.mxu0 0.0
    %375 = vmatpush1.msra.mxu0 0.0
    %376 = vmatprep.subr.mxu0 0.0
    %377 = vmatpush1.msra.mxu0 0.0
    %378 = vmatprep.subr.mxu0 0.0
    %379 = vmatpush1.msra.mxu0 0.0
    %380 = vmatprep.subr.mxu0 0.0
    %381 = vmatpush1.msra.mxu0 0.0
    %382 = vmatprep.subr.mxu0 0.0
    %383 = vmatpush1.msra.mxu0 0.0
    %384 = vmatprep.subr.mxu0 0.0
    %385 = vmatpush1.msra.mxu0 0.0
    %386 = vmatprep.subr.mxu0 0.0
    %387 = vmatpush1.msra.mxu0 0.0
    %388 = vmatprep.subr.mxu0 0.0
    %389 = vmatpush1.msra.mxu0 0.0
    %390 = vmatprep.subr.mxu0 0.0
    %391 = vmatpush1.msra.mxu0 0.0
    %392 = vmatprep.subr.mxu0 0.0
    %393 = vmatpush1.msra.mxu0 0.0
    %394 = vmatprep.subr.mxu0 0.0
    %395 = vmatpush1.msra.mxu0 0.0
    %396 = vmatprep.subr.mxu0 0.0
    %397 = vmatpush1.msra.mxu0 0.0
    %398 = vmatprep.subr.mxu0 0.0
    %399 = vmatpush1.msra.mxu0 0.0
    %400 = vmatprep.mubr.f32.mxu0 0.0
    %401 = vmatmul.mubr.f32.gmra.mrb[0].mxu0 %v307
    %v402 = vpop.f32.mrb[0].mxu0
    %v403 = vadd.f32 %v335, %v402
    %v404 = vpop.f32.mrb[0].mxu0
    %405 = vmatprep.mubr.f32.mxu0 0.0
    %406 = vmatmul.mubr.f32.gmra.mrb[0].mxu0 %v308
    %v407 = vpop.f32.mrb[0].mxu0
    %v408 = vadd.f32 %v335, %v407
    %v409 = vpop.f32.mrb[0].mxu0
    %410 = vmatprep.mubr.f32.mxu0 0.0
    %411 = vmatmul.mubr.f32.gmra.mrb[0].mxu0 %v309
    %v412 = vpop.f32.mrb[0].mxu0
    %v413 = vadd.f32 %v335, %v412
    %v414 = vpop.f32.mrb[0].mxu0
    %415 = vmatprep.mubr.f32.mxu0 0.0
    %416 = vmatmul.mubr.f32.gmra.mrb[0].mxu0 %v310
    %v417 = vpop.f32.mrb[0].mxu0
    %v418 = vadd.f32 %v335, %v417
    %v419 = vpop.f32.mrb[0].mxu0
    %420 = vmatprep.mubr.f32.mxu0 0.0
    %421 = vmatmul.mubr.f32.gmra.mrb[0].mxu0 %v311
    %v422 = vpop.f32.mrb[0].mxu0
    %v423 = vadd.f32 %v335, %v422
    %v424 = vpop.f32.mrb[0].mxu0
    %425 = vmatprep.mubr.f32.mxu0 0.0
    %426 = vmatmul.mubr.f32.gmra.mrb[0].mxu0 %v312
    %v427 = vpop.f32.mrb[0].mxu0
    %v428 = vadd.f32 %v335, %v427
    %v429 = vpop.f32.mrb[0].mxu0
    %430 = vmatprep.mubr.f32.mxu0 0.0
    %431 = vmatmul.mubr.f32.gmra.mrb[0].mxu0 %v313
    %v432 = vpop.f32.mrb[0].mxu0
    %v433 = vadd.f32 %v335, %v432
    %v434 = vpop.f32.mrb[0].mxu0
    %435 = vmatprep.mubr.f32.mxu0 0.0
    %436 = vmatmul.mubr.f32.gmra.mrb[0].mxu0 %v314
    %v437 = vpop.f32.mrb[0].mxu0
    %v438 = vadd.f32 %v335, %v437
    %v439 = vpop.f32.mrb[0].mxu0
    %440 = vdwg.mxu0
    %v441 = vmax.f32 %v403, -5.0
    %v442 = vmax.f32 %v408, -5.0
    %v443 = vmax.f32 %v413, -5.0
    %v444 = vmax.f32 %v418, -5.0
    %v445 = vmax.f32 %v423, -5.0
    %v446 = vmax.f32 %v428, -5.0
    %v447 = vmax.f32 %v433, -5.0
    %v448 = vmax.f32 %v438, -5.0
    %v449 = vmin.f32 %v441, 5.0
    %v450 = vmin.f32 %v442, 5.0
    %v451 = vmin.f32 %v443, 5.0
    %v452 = vmin.f32 %v444, 5.0
    %v453 = vmin.f32 %v445, 5.0
    %v454 = vmin.f32 %v446, 5.0
    %v455 = vmin.f32 %v447, 5.0
    %v456 = vmin.f32 %v448, 5.0
    %457 = vst [vmem:[%s3] sm:$0xff] %v449
    %458 = vst [vmem:[%s3 + $0x8] sm:$0xff] %v450
    %459 = vst [vmem:[%s3 + $0x10] sm:$0xff] %v451
    %460 = vst [vmem:[%s3 + $0x18] sm:$0xff] %v452
    %461 = vst [vmem:[%s3 + $0x20] sm:$0xff] %v453
    %462 = vst [vmem:[%s3 + $0x28] sm:$0xff] %v454
    %463 = vst [vmem:[%s3 + $0x30] sm:$0xff] %v455
    %464 = vst [vmem:[%s3 + $0x38] sm:$0xff] %v456
    // Predicated region
    $region18: #{relaxed_bernoulli_policy_forward.1} parent=1 // pred_check
      _
    $region19: #{relaxed_bernoulli_policy_forward.1} parent=1 // pred_check_branch
      %466 = sbr.rel (0) target = $region21
    $region20: #{relaxed_bernoulli_policy_forward.1} parent=1 // pred_region
      _
    $region21: #{relaxed_bernoulli_policy_forward.1} parent=1 // pred_fallthru
      _
    // Predicated region
    $region22: #{relaxed_bernoulli_policy_forward.1} parent=1 // pred_check
      _
    $region23: #{relaxed_bernoulli_policy_forward.1} parent=1 // pred_check_branch
      %468 = sbr.rel (0) target = $region25
    $region24: #{relaxed_bernoulli_policy_forward.1} parent=1 // pred_region
      _
    $region25: #{relaxed_bernoulli_policy_forward.1} parent=1 // pred_fallthru
      _
    %469 = vsyncpa [#allocation3], 1

</llo_original>
